<compile_context>
chip_gen: v6e
topology: v6e:2x2x1
jax: 0.10.0
libtpu: 0.0.40
codegen_flags: <defaults>
</compile_context>

<pallas_src>
import jax
import jax.numpy as jnp
from jax.experimental import pallas as pl
from jax.experimental.pallas import tpu as pltpu


def _round_up(x, m):
    return ((x + m - 1) // m) * m


def _make_conv_block_kernel(H, W, Cin, Cout, cin_pad):
    N = H * W
    taps = [(ky, kx) for ky in range(3) for kx in range(3)]
    w_is_pow2 = (W & (W - 1)) == 0
    w_log2 = W.bit_length() - 1 if w_is_pow2 else None

    def kernel(x_ref, w_ref, b_ref, o_ref, p_ref):
        # x_ref: (1, Cin, H*W)        one image, NCHW with spatial flattened
        # w_ref: (Cout, 9*cin_pad)    flat lane-dense weights (tap-major, ci minor)
        # b_ref: (Cout, 1)            bias column
        # o_ref: (1, Cout, H*W)       lane-dense output block (NCHW for free)
        # p_ref: (9*cin_pad, H*W)     im2col scratch in VMEM
        x = x_ref[0]                                        # (Cin, N)

        # Compile-time-shaped output coordinates (VPU only).
        s = jax.lax.broadcasted_iota(jnp.int32, (1, N), 1)
        if w_is_pow2:
            row = jnp.right_shift(s, w_log2)
            col = jnp.bitwise_and(s, W - 1)
        else:
            row = s // W
            col = s - row * W

        if cin_pad != Cin:
            # Channel-padding rows of the im2col matrix must read as zero
            # (their weight columns are zero-padded too, but 0*garbage != 0
            # if the scratch holds NaNs).  Cheap: 9*cin_pad x N f32.
            p_ref[...] = jnp.zeros_like(p_ref)

        # Build im2col: P[t*cin_pad + ci, y*W + x] = x_pad[ci, y+ky-1, x+kx-1].
        # Each tap is a lane rotation of the flat image (XLU) plus a border
        # mask (VPU); stores land at sublane-aligned offsets t*cin_pad.
        for t, (ky, kx) in enumerate(taps):
            dy, dx = ky - 1, kx - 1
            d = dy * W + dx
            shifted = x if d == 0 else pltpu.roll(x, shift=(-d) % N, axis=1)
            if dy == 0 and dx == 0:
                slab = shifted
            else:
                valid = ((row + dy >= 0) & (row + dy < H) &
                         (col + dx >= 0) & (col + dx < W))
                slab = jnp.where(valid, shifted, 0.0)
            r0 = t * cin_pad
            p_ref[r0:r0 + Cin, :] = slab

        # Single MXU contraction: (Cout, K) @ (K, H*W), K = 9*cin_pad.
        acc = jnp.dot(w_ref[...], p_ref[...],
                      preferred_element_type=jnp.float32)   # (Cout, N)
        acc = acc + b_ref[...]                               # bias broadcast over lanes
        acc = jnp.where(acc > 0, acc, 0.2 * acc)             # LeakyReLU(0.2)
        o_ref[0, :, :] = acc.astype(o_ref.dtype)

    return kernel


def conv_block_forward(x_nchw, weight_oihw, bias):
    """ConvBlock forward: Conv2d(k=3, stride=1, pad=1) + LeakyReLU(0.2).

    x_nchw:      (B, Cin, H, W)    float32 (PyTorch layout)
    weight_oihw: (Cout, Cin, 3, 3) float32 (PyTorch layout)
    bias:        (Cout,)           float32
    returns:     (B, Cout, H, W)   float32
    """
    B, Cin, H, W = x_nchw.shape
    Cout = weight_oihw.shape[0]
    N = H * W
    cin_pad = _round_up(Cin, 8)

    # NCHW stays NCHW; flattening the spatial dims is a row-major minor-dim
    # merge (layout preserving) -- no transpose and no padded copy of x.
    x_flat = x_nchw.reshape(B, Cin, N)

    # Weights: OIHW -> one flat lane-dense (Cout, 9*cin_pad) operand whose
    # column index is t*cin_pad + ci (t = ky*3+kx), zero-padded over ci so the
    # kernel's im2col rows are sublane-tile aligned.  One-time, tiny.
    w_t = jnp.transpose(weight_oihw, (0, 2, 3, 1)).reshape(Cout, 9, Cin)
    w_t = jnp.pad(w_t, ((0, 0), (0, 0), (0, cin_pad - Cin)))
    w_flat = w_t.reshape(Cout, 9 * cin_pad)
    b2d = bias.reshape(Cout, 1)

    kernel = _make_conv_block_kernel(H, W, Cin, Cout, cin_pad)

    out_flat = pl.pallas_call(
        kernel,
        out_shape=jax.ShapeDtypeStruct((B, Cout, N), x_nchw.dtype),
        grid_spec=pltpu.PrefetchScalarGridSpec(
            num_scalar_prefetch=0,
            grid=(B,),
            in_specs=[
                pl.BlockSpec((1, Cin, N), lambda b: (b, 0, 0)),
                # Constant block index -> weights/bias DMA'd once, not per step.
                pl.BlockSpec((Cout, 9 * cin_pad), lambda b: (0, 0)),
                pl.BlockSpec((Cout, 1), lambda b: (0, 0)),
            ],
            out_specs=pl.BlockSpec((1, Cout, N), lambda b: (b, 0, 0)),
            scratch_shapes=[pltpu.VMEM((9 * cin_pad, N), jnp.float32)],
        ),
        compiler_params=pltpu.CompilerParams(
            dimension_semantics=("parallel",)),
    )(x_flat, w_flat, b2d)

    # (B, Cout, H*W) -> (B, Cout, H, W): row-major minor-dim split, free.
    return out_flat.reshape(B, Cout, H, W)


def _reference(x_nchw, weight_oihw, bias):
    out = jax.lax.conv_general_dilated(
        x_nchw, weight_oihw,
        window_strides=(1, 1), padding=((1, 1), (1, 1)),
        dimension_numbers=("NCHW", "OIHW", "NCHW"))
    out = out + bias[None, :, None, None]
    return jnp.where(out > 0, out, 0.2 * out)


if __name__ == "__main__":
    # ndims=2, in_channels=4, out_channels=8, stride=1
    B, Cin, Cout, H, W = 2, 4, 8, 16, 16
    key = jax.random.PRNGKey(0)
    k_x, k_w, k_b = jax.random.split(key, 3)

    x = jax.random.normal(k_x, (B, Cin, H, W), dtype=jnp.float32)
    # Deterministic synthetic parameters (PyTorch-style fan_in-scaled uniform).
    fan_in = Cin * 3 * 3
    bound = 1.0 / (fan_in ** 0.5)
    weight = jax.random.uniform(k_w, (Cout, Cin, 3, 3), jnp.float32,
                                minval=-bound, maxval=bound)
    bias = jax.random.uniform(k_b, (Cout,), jnp.float32,
                              minval=-bound, maxval=bound)

    fwd = jax.jit(conv_block_forward)
    out = jax.block_until_ready(fwd(x, weight, bias))
    ref = jax.block_until_ready(_reference(x, weight, bias))

    assert out.shape == (B, Cout, H, W)
    assert jnp.allclose(out, ref, atol=1e-4, rtol=1e-4)

    print("KERNEL_OK")
</pallas_src>

<mosaic_0001>
module attributes {stable_mosaic.version = 11 : i64} {
  func.func @kernel(%arg0: i32, %arg1: memref<1x4x256xf32, #tpu.memory_space<vmem>>, %arg2: memref<8x72xf32, #tpu.memory_space<vmem>>, %arg3: memref<8x1xf32, #tpu.memory_space<vmem>>, %arg4: memref<1x8x256xf32, #tpu.memory_space<vmem>>, %arg5: memref<72x256xf32, #tpu.memory_space<vmem>>) attributes {dimension_semantics = [#tpu.dimension_semantics<parallel>], iteration_bounds = array<i64: 2>, scalar_prefetch = 0 : i64, scratch_operands = 1 : i64, tpu.core_type = #tpu.core_type<tc>, window_params = [{transform_indices = @transform_0, window_bounds = array<i64: 1, 4, 256>}, {pipeline_mode = #tpu.pipeline_mode<synchronous>, transform_indices = @transform_1, window_bounds = array<i64: 8, 72>}, {pipeline_mode = #tpu.pipeline_mode<synchronous>, transform_indices = @transform_2, window_bounds = array<i64: 8, 1>}, {transform_indices = @transform_3, window_bounds = array<i64: 1, 8, 256>}]} {
    %c0 = arith.constant 0 : index
    %c0_0 = arith.constant 0 : index
    %c0_1 = arith.constant 0 : index
    %0 = vector.load %arg1[%c0, %c0_0, %c0_1] : memref<1x4x256xf32, #tpu.memory_space<vmem>>, vector<1x4x256xf32>
    %1 = vector.shape_cast %0 : vector<1x4x256xf32> to vector<4x256xf32>
    %2 = tpu.iota {dimensions = array<i32: 1>} : vector<1x256xi32>
    %c4_i32 = arith.constant 4 : i32
    %3 = vector.broadcast %c4_i32 : i32 to vector<1x256xi32>
    %4 = arith.shrsi %2, %3 : vector<1x256xi32>
    %c15_i32 = arith.constant 15 : i32
    %5 = vector.broadcast %c15_i32 : i32 to vector<1x256xi32>
    %6 = arith.andi %2, %5 : vector<1x256xi32>
    %cst = arith.constant 0.000000e+00 : f32
    %7 = vector.broadcast %cst : f32 to vector<72x256xf32>
    %c0_2 = arith.constant 0 : index
    %c0_3 = arith.constant 0 : index
    %8 = vector.load %arg5[%c0_2, %c0_3] : memref<72x256xf32, #tpu.memory_space<vmem>>, vector<72x256xf32>
    tpu.vector_store %arg5[%c0_2, %c0_3], %7 {strides = array<i32>} : memref<72x256xf32, #tpu.memory_space<vmem>>, vector<72x256xf32>,
    %c17_i32 = arith.constant 17 : i32
    %9 = tpu.dynamic_rotate %1 by %c17_i32 dim 1 : vector<4x256xf32>, i32 -> vector<4x256xf32>
    %c-1_i32 = arith.constant -1 : i32
    %10 = vector.broadcast %c-1_i32 : i32 to vector<1x256xi32>
    %11 = arith.addi %4, %10 : vector<1x256xi32>
    %c0_i32 = arith.constant 0 : i32
    %12 = vector.broadcast %c0_i32 : i32 to vector<1x256xi32>
    %13 = arith.cmpi sge, %11, %12 : vector<1x256xi32>
    %c-1_i32_4 = arith.constant -1 : i32
    %14 = vector.broadcast %c-1_i32_4 : i32 to vector<1x256xi32>
    %15 = arith.addi %4, %14 : vector<1x256xi32>
    %c16_i32 = arith.constant 16 : i32
    %16 = vector.broadcast %c16_i32 : i32 to vector<1x256xi32>
    %17 = arith.cmpi slt, %15, %16 : vector<1x256xi32>
    %18 = arith.andi %13, %17 : vector<1x256xi1>
    %c-1_i32_5 = arith.constant -1 : i32
    %19 = vector.broadcast %c-1_i32_5 : i32 to vector<1x256xi32>
    %20 = arith.addi %6, %19 : vector<1x256xi32>
    %c0_i32_6 = arith.constant 0 : i32
    %21 = vector.broadcast %c0_i32_6 : i32 to vector<1x256xi32>
    %22 = arith.cmpi sge, %20, %21 : vector<1x256xi32>
    %23 = arith.andi %18, %22 : vector<1x256xi1>
    %c-1_i32_7 = arith.constant -1 : i32
    %24 = vector.broadcast %c-1_i32_7 : i32 to vector<1x256xi32>
    %25 = arith.addi %6, %24 : vector<1x256xi32>
    %c16_i32_8 = arith.constant 16 : i32
    %26 = vector.broadcast %c16_i32_8 : i32 to vector<1x256xi32>
    %27 = arith.cmpi slt, %25, %26 : vector<1x256xi32>
    %28 = arith.andi %23, %27 : vector<1x256xi1>
    %cst_9 = arith.constant 0.000000e+00 : f32
    %29 = vector.shape_cast %28 : vector<1x256xi1> to vector<1x256xi1>
    %30 = vector.broadcast %29 : vector<1x256xi1> to vector<4x256xi1>
    %31 = vector.broadcast %cst_9 : f32 to vector<4x256xf32>
    %32 = arith.select %30, %9, %31 : vector<4x256xi1>, vector<4x256xf32>
    %c0_10 = arith.constant 0 : index
    %c0_11 = arith.constant 0 : index
    %33 = vector.load %arg5[%c0_10, %c0_11] : memref<72x256xf32, #tpu.memory_space<vmem>>, vector<4x256xf32>
    tpu.vector_store %arg5[%c0_10, %c0_11], %32 {strides = array<i32>} : memref<72x256xf32, #tpu.memory_space<vmem>>, vector<4x256xf32>,
    %c16_i32_12 = arith.constant 16 : i32
    %34 = tpu.dynamic_rotate %1 by %c16_i32_12 dim 1 : vector<4x256xf32>, i32 -> vector<4x256xf32>
    %c-1_i32_13 = arith.constant -1 : i32
    %35 = vector.broadcast %c-1_i32_13 : i32 to vector<1x256xi32>
    %36 = arith.addi %4, %35 : vector<1x256xi32>
    %c0_i32_14 = arith.constant 0 : i32
    %37 = vector.broadcast %c0_i32_14 : i32 to vector<1x256xi32>
    %38 = arith.cmpi sge, %36, %37 : vector<1x256xi32>
    %c-1_i32_15 = arith.constant -1 : i32
    %39 = vector.broadcast %c-1_i32_15 : i32 to vector<1x256xi32>
    %40 = arith.addi %4, %39 : vector<1x256xi32>
    %c16_i32_16 = arith.constant 16 : i32
    %41 = vector.broadcast %c16_i32_16 : i32 to vector<1x256xi32>
    %42 = arith.cmpi slt, %40, %41 : vector<1x256xi32>
    %43 = arith.andi %38, %42 : vector<1x256xi1>
    %c0_i32_17 = arith.constant 0 : i32
    %44 = vector.broadcast %c0_i32_17 : i32 to vector<1x256xi32>
    %45 = arith.addi %6, %44 : vector<1x256xi32>
    %c0_i32_18 = arith.constant 0 : i32
    %46 = vector.broadcast %c0_i32_18 : i32 to vector<1x256xi32>
    %47 = arith.cmpi sge, %45, %46 : vector<1x256xi32>
    %48 = arith.andi %43, %47 : vector<1x256xi1>
    %c0_i32_19 = arith.constant 0 : i32
    %49 = vector.broadcast %c0_i32_19 : i32 to vector<1x256xi32>
    %50 = arith.addi %6, %49 : vector<1x256xi32>
    %c16_i32_20 = arith.constant 16 : i32
    %51 = vector.broadcast %c16_i32_20 : i32 to vector<1x256xi32>
    %52 = arith.cmpi slt, %50, %51 : vector<1x256xi32>
    %53 = arith.andi %48, %52 : vector<1x256xi1>
    %cst_21 = arith.constant 0.000000e+00 : f32
    %54 = vector.shape_cast %53 : vector<1x256xi1> to vector<1x256xi1>
    %55 = vector.broadcast %54 : vector<1x256xi1> to vector<4x256xi1>
    %56 = vector.broadcast %cst_21 : f32 to vector<4x256xf32>
    %57 = arith.select %55, %34, %56 : vector<4x256xi1>, vector<4x256xf32>
    %c8 = arith.constant 8 : index
    %c0_22 = arith.constant 0 : index
    %58 = vector.load %arg5[%c8, %c0_22] : memref<72x256xf32, #tpu.memory_space<vmem>>, vector<4x256xf32>
    tpu.vector_store %arg5[%c8, %c0_22], %57 {strides = array<i32>} : memref<72x256xf32, #tpu.memory_space<vmem>>, vector<4x256xf32>,
    %c15_i32_23 = arith.constant 15 : i32
    %59 = tpu.dynamic_rotate %1 by %c15_i32_23 dim 1 : vector<4x256xf32>, i32 -> vector<4x256xf32>
    %c-1_i32_24 = arith.constant -1 : i32
    %60 = vector.broadcast %c-1_i32_24 : i32 to vector<1x256xi32>
    %61 = arith.addi %4, %60 : vector<1x256xi32>
    %c0_i32_25 = arith.constant 0 : i32
    %62 = vector.broadcast %c0_i32_25 : i32 to vector<1x256xi32>
    %63 = arith.cmpi sge, %61, %62 : vector<1x256xi32>
    %c-1_i32_26 = arith.constant -1 : i32
    %64 = vector.broadcast %c-1_i32_26 : i32 to vector<1x256xi32>
    %65 = arith.addi %4, %64 : vector<1x256xi32>
    %c16_i32_27 = arith.constant 16 : i32
    %66 = vector.broadcast %c16_i32_27 : i32 to vector<1x256xi32>
    %67 = arith.cmpi slt, %65, %66 : vector<1x256xi32>
    %68 = arith.andi %63, %67 : vector<1x256xi1>
    %c1_i32 = arith.constant 1 : i32
    %69 = vector.broadcast %c1_i32 : i32 to vector<1x256xi32>
    %70 = arith.addi %6, %69 : vector<1x256xi32>
    %c0_i32_28 = arith.constant 0 : i32
    %71 = vector.broadcast %c0_i32_28 : i32 to vector<1x256xi32>
    %72 = arith.cmpi sge, %70, %71 : vector<1x256xi32>
    %73 = arith.andi %68, %72 : vector<1x256xi1>
    %c1_i32_29 = arith.constant 1 : i32
    %74 = vector.broadcast %c1_i32_29 : i32 to vector<1x256xi32>
    %75 = arith.addi %6, %74 : vector<1x256xi32>
    %c16_i32_30 = arith.constant 16 : i32
    %76 = vector.broadcast %c16_i32_30 : i32 to vector<1x256xi32>
    %77 = arith.cmpi slt, %75, %76 : vector<1x256xi32>
    %78 = arith.andi %73, %77 : vector<1x256xi1>
    %cst_31 = arith.constant 0.000000e+00 : f32
    %79 = vector.shape_cast %78 : vector<1x256xi1> to vector<1x256xi1>
    %80 = vector.broadcast %79 : vector<1x256xi1> to vector<4x256xi1>
    %81 = vector.broadcast %cst_31 : f32 to vector<4x256xf32>
    %82 = arith.select %80, %59, %81 : vector<4x256xi1>, vector<4x256xf32>
    %c16 = arith.constant 16 : index
    %c0_32 = arith.constant 0 : index
    %83 = vector.load %arg5[%c16, %c0_32] : memref<72x256xf32, #tpu.memory_space<vmem>>, vector<4x256xf32>
    tpu.vector_store %arg5[%c16, %c0_32], %82 {strides = array<i32>} : memref<72x256xf32, #tpu.memory_space<vmem>>, vector<4x256xf32>,
    %c1_i32_33 = arith.constant 1 : i32
    %84 = tpu.dynamic_rotate %1 by %c1_i32_33 dim 1 : vector<4x256xf32>, i32 -> vector<4x256xf32>
    %c0_i32_34 = arith.constant 0 : i32
    %85 = vector.broadcast %c0_i32_34 : i32 to vector<1x256xi32>
    %86 = arith.addi %4, %85 : vector<1x256xi32>
    %c0_i32_35 = arith.constant 0 : i32
    %87 = vector.broadcast %c0_i32_35 : i32 to vector<1x256xi32>
    %88 = arith.cmpi sge, %86, %87 : vector<1x256xi32>
    %c0_i32_36 = arith.constant 0 : i32
    %89 = vector.broadcast %c0_i32_36 : i32 to vector<1x256xi32>
    %90 = arith.addi %4, %89 : vector<1x256xi32>
    %c16_i32_37 = arith.constant 16 : i32
    %91 = vector.broadcast %c16_i32_37 : i32 to vector<1x256xi32>
    %92 = arith.cmpi slt, %90, %91 : vector<1x256xi32>
    %93 = arith.andi %88, %92 : vector<1x256xi1>
    %c-1_i32_38 = arith.constant -1 : i32
    %94 = vector.broadcast %c-1_i32_38 : i32 to vector<1x256xi32>
    %95 = arith.addi %6, %94 : vector<1x256xi32>
    %c0_i32_39 = arith.constant 0 : i32
    %96 = vector.broadcast %c0_i32_39 : i32 to vector<1x256xi32>
    %97 = arith.cmpi sge, %95, %96 : vector<1x256xi32>
    %98 = arith.andi %93, %97 : vector<1x256xi1>
    %c-1_i32_40 = arith.constant -1 : i32
    %99 = vector.broadcast %c-1_i32_40 : i32 to vector<1x256xi32>
    %100 = arith.addi %6, %99 : vector<1x256xi32>
    %c16_i32_41 = arith.constant 16 : i32
    %101 = vector.broadcast %c16_i32_41 : i32 to vector<1x256xi32>
    %102 = arith.cmpi slt, %100, %101 : vector<1x256xi32>
    %103 = arith.andi %98, %102 : vector<1x256xi1>
    %cst_42 = arith.constant 0.000000e+00 : f32
    %104 = vector.shape_cast %103 : vector<1x256xi1> to vector<1x256xi1>
    %105 = vector.broadcast %104 : vector<1x256xi1> to vector<4x256xi1>
    %106 = vector.broadcast %cst_42 : f32 to vector<4x256xf32>
    %107 = arith.select %105, %84, %106 : vector<4x256xi1>, vector<4x256xf32>
    %c24 = arith.constant 24 : index
    %c0_43 = arith.constant 0 : index
    %108 = vector.load %arg5[%c24, %c0_43] : memref<72x256xf32, #tpu.memory_space<vmem>>, vector<4x256xf32>
    tpu.vector_store %arg5[%c24, %c0_43], %107 {strides = array<i32>} : memref<72x256xf32, #tpu.memory_space<vmem>>, vector<4x256xf32>,
    %c32 = arith.constant 32 : index
    %c0_44 = arith.constant 0 : index
    %109 = vector.load %arg5[%c32, %c0_44] : memref<72x256xf32, #tpu.memory_space<vmem>>, vector<4x256xf32>
    tpu.vector_store %arg5[%c32, %c0_44], %1 {strides = array<i32>} : memref<72x256xf32, #tpu.memory_space<vmem>>, vector<4x256xf32>,
    %c255_i32 = arith.constant 255 : i32
    %110 = tpu.dynamic_rotate %1 by %c255_i32 dim 1 : vector<4x256xf32>, i32 -> vector<4x256xf32>
    %c0_i32_45 = arith.constant 0 : i32
    %111 = vector.broadcast %c0_i32_45 : i32 to vector<1x256xi32>
    %112 = arith.addi %4, %111 : vector<1x256xi32>
    %c0_i32_46 = arith.constant 0 : i32
    %113 = vector.broadcast %c0_i32_46 : i32 to vector<1x256xi32>
    %114 = arith.cmpi sge, %112, %113 : vector<1x256xi32>
    %c0_i32_47 = arith.constant 0 : i32
    %115 = vector.broadcast %c0_i32_47 : i32 to vector<1x256xi32>
    %116 = arith.addi %4, %115 : vector<1x256xi32>
    %c16_i32_48 = arith.constant 16 : i32
    %117 = vector.broadcast %c16_i32_48 : i32 to vector<1x256xi32>
    %118 = arith.cmpi slt, %116, %117 : vector<1x256xi32>
    %119 = arith.andi %114, %118 : vector<1x256xi1>
    %c1_i32_49 = arith.constant 1 : i32
    %120 = vector.broadcast %c1_i32_49 : i32 to vector<1x256xi32>
    %121 = arith.addi %6, %120 : vector<1x256xi32>
    %c0_i32_50 = arith.constant 0 : i32
    %122 = vector.broadcast %c0_i32_50 : i32 to vector<1x256xi32>
    %123 = arith.cmpi sge, %121, %122 : vector<1x256xi32>
    %124 = arith.andi %119, %123 : vector<1x256xi1>
    %c1_i32_51 = arith.constant 1 : i32
    %125 = vector.broadcast %c1_i32_51 : i32 to vector<1x256xi32>
    %126 = arith.addi %6, %125 : vector<1x256xi32>
    %c16_i32_52 = arith.constant 16 : i32
    %127 = vector.broadcast %c16_i32_52 : i32 to vector<1x256xi32>
    %128 = arith.cmpi slt, %126, %127 : vector<1x256xi32>
    %129 = arith.andi %124, %128 : vector<1x256xi1>
    %cst_53 = arith.constant 0.000000e+00 : f32
    %130 = vector.shape_cast %129 : vector<1x256xi1> to vector<1x256xi1>
    %131 = vector.broadcast %130 : vector<1x256xi1> to vector<4x256xi1>
    %132 = vector.broadcast %cst_53 : f32 to vector<4x256xf32>
    %133 = arith.select %131, %110, %132 : vector<4x256xi1>, vector<4x256xf32>
    %c40 = arith.constant 40 : index
    %c0_54 = arith.constant 0 : index
    %134 = vector.load %arg5[%c40, %c0_54] : memref<72x256xf32, #tpu.memory_space<vmem>>, vector<4x256xf32>
    tpu.vector_store %arg5[%c40, %c0_54], %133 {strides = array<i32>} : memref<72x256xf32, #tpu.memory_space<vmem>>, vector<4x256xf32>,
    %c241_i32 = arith.constant 241 : i32
    %135 = tpu.dynamic_rotate %1 by %c241_i32 dim 1 : vector<4x256xf32>, i32 -> vector<4x256xf32>
    %c1_i32_55 = arith.constant 1 : i32
    %136 = vector.broadcast %c1_i32_55 : i32 to vector<1x256xi32>
    %137 = arith.addi %4, %136 : vector<1x256xi32>
    %c0_i32_56 = arith.constant 0 : i32
    %138 = vector.broadcast %c0_i32_56 : i32 to vector<1x256xi32>
    %139 = arith.cmpi sge, %137, %138 : vector<1x256xi32>
    %c1_i32_57 = arith.constant 1 : i32
    %140 = vector.broadcast %c1_i32_57 : i32 to vector<1x256xi32>
    %141 = arith.addi %4, %140 : vector<1x256xi32>
    %c16_i32_58 = arith.constant 16 : i32
    %142 = vector.broadcast %c16_i32_58 : i32 to vector<1x256xi32>
    %143 = arith.cmpi slt, %141, %142 : vector<1x256xi32>
    %144 = arith.andi %139, %143 : vector<1x256xi1>
    %c-1_i32_59 = arith.constant -1 : i32
    %145 = vector.broadcast %c-1_i32_59 : i32 to vector<1x256xi32>
    %146 = arith.addi %6, %145 : vector<1x256xi32>
    %c0_i32_60 = arith.constant 0 : i32
    %147 = vector.broadcast %c0_i32_60 : i32 to vector<1x256xi32>
    %148 = arith.cmpi sge, %146, %147 : vector<1x256xi32>
    %149 = arith.andi %144, %148 : vector<1x256xi1>
    %c-1_i32_61 = arith.constant -1 : i32
    %150 = vector.broadcast %c-1_i32_61 : i32 to vector<1x256xi32>
    %151 = arith.addi %6, %150 : vector<1x256xi32>
    %c16_i32_62 = arith.constant 16 : i32
    %152 = vector.broadcast %c16_i32_62 : i32 to vector<1x256xi32>
    %153 = arith.cmpi slt, %151, %152 : vector<1x256xi32>
    %154 = arith.andi %149, %153 : vector<1x256xi1>
    %cst_63 = arith.constant 0.000000e+00 : f32
    %155 = vector.shape_cast %154 : vector<1x256xi1> to vector<1x256xi1>
    %156 = vector.broadcast %155 : vector<1x256xi1> to vector<4x256xi1>
    %157 = vector.broadcast %cst_63 : f32 to vector<4x256xf32>
    %158 = arith.select %156, %135, %157 : vector<4x256xi1>, vector<4x256xf32>
    %c48 = arith.constant 48 : index
    %c0_64 = arith.constant 0 : index
    %159 = vector.load %arg5[%c48, %c0_64] : memref<72x256xf32, #tpu.memory_space<vmem>>, vector<4x256xf32>
    tpu.vector_store %arg5[%c48, %c0_64], %158 {strides = array<i32>} : memref<72x256xf32, #tpu.memory_space<vmem>>, vector<4x256xf32>,
    %c240_i32 = arith.constant 240 : i32
    %160 = tpu.dynamic_rotate %1 by %c240_i32 dim 1 : vector<4x256xf32>, i32 -> vector<4x256xf32>
    %c1_i32_65 = arith.constant 1 : i32
    %161 = vector.broadcast %c1_i32_65 : i32 to vector<1x256xi32>
    %162 = arith.addi %4, %161 : vector<1x256xi32>
    %c0_i32_66 = arith.constant 0 : i32
    %163 = vector.broadcast %c0_i32_66 : i32 to vector<1x256xi32>
    %164 = arith.cmpi sge, %162, %163 : vector<1x256xi32>
    %c1_i32_67 = arith.constant 1 : i32
    %165 = vector.broadcast %c1_i32_67 : i32 to vector<1x256xi32>
    %166 = arith.addi %4, %165 : vector<1x256xi32>
    %c16_i32_68 = arith.constant 16 : i32
    %167 = vector.broadcast %c16_i32_68 : i32 to vector<1x256xi32>
    %168 = arith.cmpi slt, %166, %167 : vector<1x256xi32>
    %169 = arith.andi %164, %168 : vector<1x256xi1>
    %c0_i32_69 = arith.constant 0 : i32
    %170 = vector.broadcast %c0_i32_69 : i32 to vector<1x256xi32>
    %171 = arith.addi %6, %170 : vector<1x256xi32>
    %c0_i32_70 = arith.constant 0 : i32
    %172 = vector.broadcast %c0_i32_70 : i32 to vector<1x256xi32>
    %173 = arith.cmpi sge, %171, %172 : vector<1x256xi32>
    %174 = arith.andi %169, %173 : vector<1x256xi1>
    %c0_i32_71 = arith.constant 0 : i32
    %175 = vector.broadcast %c0_i32_71 : i32 to vector<1x256xi32>
    %176 = arith.addi %6, %175 : vector<1x256xi32>
    %c16_i32_72 = arith.constant 16 : i32
    %177 = vector.broadcast %c16_i32_72 : i32 to vector<1x256xi32>
    %178 = arith.cmpi slt, %176, %177 : vector<1x256xi32>
    %179 = arith.andi %174, %178 : vector<1x256xi1>
    %cst_73 = arith.constant 0.000000e+00 : f32
    %180 = vector.shape_cast %179 : vector<1x256xi1> to vector<1x256xi1>
    %181 = vector.broadcast %180 : vector<1x256xi1> to vector<4x256xi1>
    %182 = vector.broadcast %cst_73 : f32 to vector<4x256xf32>
    %183 = arith.select %181, %160, %182 : vector<4x256xi1>, vector<4x256xf32>
    %c56 = arith.constant 56 : index
    %c0_74 = arith.constant 0 : index
    %184 = vector.load %arg5[%c56, %c0_74] : memref<72x256xf32, #tpu.memory_space<vmem>>, vector<4x256xf32>
    tpu.vector_store %arg5[%c56, %c0_74], %183 {strides = array<i32>} : memref<72x256xf32, #tpu.memory_space<vmem>>, vector<4x256xf32>,
    %c239_i32 = arith.constant 239 : i32
    %185 = tpu.dynamic_rotate %1 by %c239_i32 dim 1 : vector<4x256xf32>, i32 -> vector<4x256xf32>
    %c1_i32_75 = arith.constant 1 : i32
    %186 = vector.broadcast %c1_i32_75 : i32 to vector<1x256xi32>
    %187 = arith.addi %4, %186 : vector<1x256xi32>
    %c0_i32_76 = arith.constant 0 : i32
    %188 = vector.broadcast %c0_i32_76 : i32 to vector<1x256xi32>
    %189 = arith.cmpi sge, %187, %188 : vector<1x256xi32>
    %c1_i32_77 = arith.constant 1 : i32
    %190 = vector.broadcast %c1_i32_77 : i32 to vector<1x256xi32>
    %191 = arith.addi %4, %190 : vector<1x256xi32>
    %c16_i32_78 = arith.constant 16 : i32
    %192 = vector.broadcast %c16_i32_78 : i32 to vector<1x256xi32>
    %193 = arith.cmpi slt, %191, %192 : vector<1x256xi32>
    %194 = arith.andi %189, %193 : vector<1x256xi1>
    %c1_i32_79 = arith.constant 1 : i32
    %195 = vector.broadcast %c1_i32_79 : i32 to vector<1x256xi32>
    %196 = arith.addi %6, %195 : vector<1x256xi32>
    %c0_i32_80 = arith.constant 0 : i32
    %197 = vector.broadcast %c0_i32_80 : i32 to vector<1x256xi32>
    %198 = arith.cmpi sge, %196, %197 : vector<1x256xi32>
    %199 = arith.andi %194, %198 : vector<1x256xi1>
    %c1_i32_81 = arith.constant 1 : i32
    %200 = vector.broadcast %c1_i32_81 : i32 to vector<1x256xi32>
    %201 = arith.addi %6, %200 : vector<1x256xi32>
    %c16_i32_82 = arith.constant 16 : i32
    %202 = vector.broadcast %c16_i32_82 : i32 to vector<1x256xi32>
    %203 = arith.cmpi slt, %201, %202 : vector<1x256xi32>
    %204 = arith.andi %199, %203 : vector<1x256xi1>
    %cst_83 = arith.constant 0.000000e+00 : f32
    %205 = vector.shape_cast %204 : vector<1x256xi1> to vector<1x256xi1>
    %206 = vector.broadcast %205 : vector<1x256xi1> to vector<4x256xi1>
    %207 = vector.broadcast %cst_83 : f32 to vector<4x256xf32>
    %208 = arith.select %206, %185, %207 : vector<4x256xi1>, vector<4x256xf32>
    %c64 = arith.constant 64 : index
    %c0_84 = arith.constant 0 : index
    %209 = vector.load %arg5[%c64, %c0_84] : memref<72x256xf32, #tpu.memory_space<vmem>>, vector<4x256xf32>
    tpu.vector_store %arg5[%c64, %c0_84], %208 {strides = array<i32>} : memref<72x256xf32, #tpu.memory_space<vmem>>, vector<4x256xf32>,
    %c0_85 = arith.constant 0 : index
    %c0_86 = arith.constant 0 : index
    %210 = vector.load %arg2[%c0_85, %c0_86] : memref<8x72xf32, #tpu.memory_space<vmem>>, vector<8x72xf32>
    %c0_87 = arith.constant 0 : index
    %c0_88 = arith.constant 0 : index
    %211 = vector.load %arg5[%c0_87, %c0_88] : memref<72x256xf32, #tpu.memory_space<vmem>>, vector<72x256xf32>
    %cst_89 = arith.constant dense<0.000000e+00> : vector<8x256xf32>
    %212 = tpu.matmul %210, %211, %cst_89 {dimension_numbers = #tpu.dot_dimension_numbers<[1], [0], [0], [1], [0, 0, 1, 1], [], []>} : vector<8x72xf32>, vector<72x256xf32>, vector<8x256xf32> -> vector<8x256xf32>
    %c0_90 = arith.constant 0 : index
    %c0_91 = arith.constant 0 : index
    %213 = vector.load %arg3[%c0_90, %c0_91] : memref<8x1xf32, #tpu.memory_space<vmem>>, vector<8x1xf32>
    %214 = vector.broadcast %213 : vector<8x1xf32> to vector<8x256xf32>
    %215 = arith.addf %212, %214 : vector<8x256xf32>
    %cst_92 = arith.constant 0.000000e+00 : f32
    %216 = vector.broadcast %cst_92 : f32 to vector<8x256xf32>
    %217 = arith.cmpf ogt, %215, %216 : vector<8x256xf32>
    %cst_93 = arith.constant 2.000000e-01 : f32
    %218 = vector.broadcast %cst_93 : f32 to vector<8x256xf32>
    %219 = arith.mulf %218, %215 : vector<8x256xf32>
    %220 = arith.select %217, %215, %219 : vector<8x256xi1>, vector<8x256xf32>
    %c0_94 = arith.constant 0 : index
    %c0_95 = arith.constant 0 : index
    %c0_96 = arith.constant 0 : index
    %221 = vector.load %arg4[%c0_94, %c0_95, %c0_96] : memref<1x8x256xf32, #tpu.memory_space<vmem>>, vector<1x8x256xf32>
    %222 = vector.shape_cast %221 : vector<1x8x256xf32> to vector<8x256xf32>
    %223 = vector.shape_cast %220 : vector<8x256xf32> to vector<1x8x256xf32>
    tpu.vector_store %arg4[%c0_94, %c0_95, %c0_96], %223 {strides = array<i32>} : memref<1x8x256xf32, #tpu.memory_space<vmem>>, vector<1x8x256xf32>,
    return
  }
  func.func @transform_0(%arg0: i32) -> (i32, i32, i32) {
    %c0_i32 = arith.constant 0 : i32
    %c0_i32_0 = arith.constant 0 : i32
    %c0_i32_1 = arith.constant 0 : i32
    return %arg0, %c0_i32, %c0_i32_0 : i32, i32, i32
  }
  func.func @transform_1(%arg0: i32) -> (i32, i32) {
    %c0_i32 = arith.constant 0 : i32
    %c0_i32_0 = arith.constant 0 : i32
    %c0_i32_1 = arith.constant 0 : i32
    return %c0_i32, %c0_i32_0 : i32, i32
  }
  func.func @transform_2(%arg0: i32) -> (i32, i32) {
    %c0_i32 = arith.constant 0 : i32
    %c0_i32_0 = arith.constant 0 : i32
    %c0_i32_1 = arith.constant 0 : i32
    return %c0_i32, %c0_i32_0 : i32, i32
  }
  func.func @transform_3(%arg0: i32) -> (i32, i32, i32) {
    %c0_i32 = arith.constant 0 : i32
    %c0_i32_0 = arith.constant 0 : i32
    %c0_i32_1 = arith.constant 0 : i32
    return %arg0, %c0_i32, %c0_i32_0 : i32, i32, i32
  }
}

</mosaic_0001>

<llo_original>
// kernel: conv_block_forward.1
$region0: #{conv_block_forward.1}
  #allocation0 [shape = 'u32[]', space=smem, size = 0x4, offset = 0x4, fixed_abs, tag = 'smem constant byte address 0x4 - core index']
  #allocation1 [shape = 'u32[144,128]{1,0:T(1,128)}', space=vmem, size = 0x12000, scoped, tag = 'internal scratch']
  #allocation2 [shape = 'f32[72,256]{1,0:T(8,128)}', space=vmem, size = 0x12000, scoped, tag = 'scratch operand']
  %s0 = inlined_call_operand.vmem [shape: f32[2,4,256], index: 0, kind: input, shape index: {}]
  %s1 = inlined_call_operand.vmem [shape: f32[8,72], index: 1, kind: input, shape index: {}]
  %s2 = inlined_call_operand.vmem [shape: f32[8,1], index: 2, kind: input, shape index: {}]
  %s3 = inlined_call_operand.vmem [shape: f32[2,8,256], index: 3, kind: output, shape index: {}]
  %s4 = sld [smem:[#allocation0]]
  $region45: #{conv_block_forward.1} parent=0
    _
  %s6 = ssub.s32 1, %s4
  %s7 = scalar_select 0, %s6, %s4
  loop: start=0, step=1, limit=4
  $region2: #{conv_block_forward.1} parent=0 // loop_pre_header
    _
  $region3: #{conv_block_forward.1} parent=0 // loop_header
    %s9 = sphi 0, %s13
    %p10 = scmp.ge.s32.totalorder %s9, 4
    %s19 = sphi 0, %s21
    %s22 = sphi 0, %s19
    %s23 = sphi 0, %s22
    %s39 = sphi 0, %s23
    %s43 = sphi 0, %s43
    %s45 = sphi 0, %s43
    %s46 = sphi 0, %s45
    %s60 = sphi 0, %s46
    %s64 = sphi 0, %s64
    %s66 = sphi 0, %s64
    %s67 = sphi 0, %s66
    %s81 = sphi 0, %s67
    %s87 = sphi 0, %s89
    %s90 = sphi 0, %s87
    %s91 = sphi 0, %s90
    %s107 = sphi 0, %s91
  $region4: #{conv_block_forward.1} parent=0 // loop_header_branch
    %12 = sbr.rel (%p10) target = $region8
  $region5: #{conv_block_forward.1} parent=0 // loop_body
    %s14 = ssub.s32 %s9, 1
    %s15 = ssub.s32 %s9, 2
    %s16 = sadd.s32 %s9, 1
    %s17 = ssub.s32 %s9, %s16
    %p18 = scmp.eq.s32.totalorder %s17, 0
    %s20 = sadd.s32 %s19, 1
    %s21 = scalar_select %p18, %s19, %s20
    %p24 = pneg %p18
    %p25 = scmp.eq.s32.totalorder %s9, 1
    %p26 = por %p24, %p25
    %p27 = scmp.ne.s32.totalorder %s19, %s22
    %p28 = scmp.eq.s32.totalorder %s9, 0
    %p29 = por %p27, %p28
    %p30 = scmp.ne.s32.totalorder %s19, %s22
    %p31 = scmp.eq.s32.totalorder %s14, 1
    %p32 = por %p30, %p31
    %p33 = scmp.ne.s32.totalorder %s22, %s23
    %p34 = scmp.eq.s32.totalorder %s14, 0
    %p35 = por %p33, %p34
    %p36 = scmp.ne.s32.totalorder %s22, %s23
    %p37 = scmp.eq.s32.totalorder %s15, 1
    %p38 = por %p36, %p37
    %p40 = scmp.ne.s32.totalorder %s23, %s39
    %p41 = scmp.eq.s32.totalorder %s15, 0
    %p42 = por %p40, %p41
    %s44 = sadd.s32 %s43, 1
    %p47 = scmp.eq.s32.totalorder %s9, 1
    %p48 = scmp.ne.s32.totalorder %s43, %s45
    %p49 = scmp.eq.s32.totalorder %s9, 0
    %p50 = por %p48, %p49
    %p51 = scmp.ne.s32.totalorder %s43, %s45
    %p52 = scmp.eq.s32.totalorder %s14, 1
    %p53 = por %p51, %p52
    %p54 = scmp.ne.s32.totalorder %s45, %s46
    %p55 = scmp.eq.s32.totalorder %s14, 0
    %p56 = por %p54, %p55
    %p57 = scmp.ne.s32.totalorder %s45, %s46
    %p58 = scmp.eq.s32.totalorder %s15, 1
    %p59 = por %p57, %p58
    %p61 = scmp.ne.s32.totalorder %s46, %s60
    %p62 = scmp.eq.s32.totalorder %s15, 0
    %p63 = por %p61, %p62
    %s65 = sadd.s32 %s64, 1
    %p68 = scmp.eq.s32.totalorder %s9, 1
    %p69 = scmp.ne.s32.totalorder %s64, %s66
    %p70 = scmp.eq.s32.totalorder %s9, 0
    %p71 = por %p69, %p70
    %p72 = scmp.ne.s32.totalorder %s64, %s66
    %p73 = scmp.eq.s32.totalorder %s14, 1
    %p74 = por %p72, %p73
    %p75 = scmp.ne.s32.totalorder %s66, %s67
    %p76 = scmp.eq.s32.totalorder %s14, 0
    %p77 = por %p75, %p76
    %p78 = scmp.ne.s32.totalorder %s66, %s67
    %p79 = scmp.eq.s32.totalorder %s15, 1
    %p80 = por %p78, %p79
    %p82 = scmp.ne.s32.totalorder %s67, %s81
    %p83 = scmp.eq.s32.totalorder %s15, 0
    %p84 = por %p82, %p83
    %s85 = ssub.s32 %s9, %s16
    %p86 = scmp.eq.s32.totalorder %s85, 0
    %s88 = sadd.s32 %s87, 1
    %s89 = scalar_select %p86, %s87, %s88
    %p92 = pneg %p86
    %p93 = scmp.eq.s32.totalorder %s9, 1
    %p94 = por %p92, %p93
    %p95 = scmp.ne.s32.totalorder %s87, %s90
    %p96 = scmp.eq.s32.totalorder %s9, 0
    %p97 = por %p95, %p96
    %p98 = scmp.ne.s32.totalorder %s87, %s90
    %p99 = scmp.eq.s32.totalorder %s14, 1
    %p100 = por %p98, %p99
    %p101 = scmp.ne.s32.totalorder %s90, %s91
    %p102 = scmp.eq.s32.totalorder %s14, 0
    %p103 = por %p101, %p102
    %p104 = scmp.ne.s32.totalorder %s90, %s91
    %p105 = scmp.eq.s32.totalorder %s15, 1
    %p106 = por %p104, %p105
    %p108 = scmp.ne.s32.totalorder %s91, %s107
    %p109 = scmp.eq.s32.totalorder %s15, 0
    %p110 = por %p108, %p109
    %p111 = scmp.le.s32.totalorder 1, %s9
    %p112 = scmp.lt.s32.totalorder %s9, 3
    %p113 = pnand %p111, %p112
    %p114 = pneg %p113
    // Predicated region
    $region9: #{conv_block_forward.1} parent=5 // pred_check
      _
    $region10: #{conv_block_forward.1} parent=5 // pred_check_branch
      %116 = sbr.rel (%p113) target = $region12
    $region11: #{conv_block_forward.1} parent=5 // pred_region
      %s117 = ssub.s32 %s9, 1
      // Predicated region
      $region13: #{conv_block_forward.1} parent=11 // pred_check
        %p118 = pneg %p56
      $region14: #{conv_block_forward.1} parent=11 // pred_check_branch
        %120 = sbr.rel (%p118) target = $region16
      $region15: #{conv_block_forward.1} parent=11 // pred_region
        _
      $region16: #{conv_block_forward.1} parent=11 // pred_fallthru
        _
      // Predicated region
      $region17: #{conv_block_forward.1} parent=11 // pred_check
        %p121 = pneg %p77
      $region18: #{conv_block_forward.1} parent=11 // pred_check_branch
        %123 = sbr.rel (%p121) target = $region20
      $region19: #{conv_block_forward.1} parent=11 // pred_region
        _
      $region20: #{conv_block_forward.1} parent=11 // pred_fallthru
        _
    $region12: #{conv_block_forward.1} parent=5 // pred_fallthru
      _
    %p124 = scmp.lt.s32.totalorder %s9, 2
    // Predicated region
    $region21: #{conv_block_forward.1} parent=5 // pred_check
      %p125 = pneg %p124
    $region22: #{conv_block_forward.1} parent=5 // pred_check_branch
      %127 = sbr.rel (%p125) target = $region24
    $region23: #{conv_block_forward.1} parent=5 // pred_region
      // Predicated region
      $region25: #{conv_block_forward.1} parent=23 // pred_check
        %p128 = pneg %p29
      $region26: #{conv_block_forward.1} parent=23 // pred_check_branch
        %130 = sbr.rel (%p128) target = $region28
      $region27: #{conv_block_forward.1} parent=23 // pred_region
        %p131 = scmp.lt.s32.totalorder %s9, 1
        %s132 = scalar_select %p131, %s9, 1
        %s133 = smul.addr %s132, 2
        %s134 = smul.addr %s133, 4
        %s135 = scalar_lea.vmem %s0, %s134
      $region28: #{conv_block_forward.1} parent=23 // pred_fallthru
        _
    $region24: #{conv_block_forward.1} parent=5 // pred_fallthru
      _
    %p136 = scmp.le.s32.totalorder 1, %s9
    %p137 = scmp.lt.s32.totalorder %s9, 3
    %p138 = pnand %p136, %p137
    %p139 = pneg %p138
    // Predicated region
    $region29: #{conv_block_forward.1} parent=5 // pred_check
      _
    $region30: #{conv_block_forward.1} parent=5 // pred_check_branch
      %141 = sbr.rel (%p138) target = $region32
    $region31: #{conv_block_forward.1} parent=5 // pred_region
      %s142 = ssub.s32 %s9, 1
      %p143 = scmp.lt.s32.totalorder %s14, 1
      %s144 = scalar_select %p143, %s14, 1
      %s145 = smul.addr %s144, 2
      %s146 = smul.addr %s145, 4
      %s147 = scalar_lea.vmem %s0, %s146
      %p148 = pneg %p35
      %p149 = pneg %p32
      %p150 = pneg %p56
      %p151 = pneg %p53
      %p152 = pneg %p77
      %p153 = pneg %p74
      %p154 = pneg %p103
      %p155 = pneg %p100
      %p156 = scmp.lt.s32.totalorder %s14, 1
      %s157 = scalar_select %p156, %s14, 1
      %s158 = smul.addr %s157, 2
      %s159 = smul.addr %s158, 8
      %s160 = scalar_lea.vmem %s3, %s159
      %p161 = scmp.lt.s32.totalorder %s14, 1
      %s162 = scalar_select %p161, %s14, 1
      %s163 = smul.addr %s162, 2
      %s164 = smul.addr %s163, 4
      %s165 = scalar_lea.vmem %s0, %s164
      %p166 = scmp.lt.s32.totalorder %s14, 1
      %s167 = scalar_select %p166, %s14, 1
      %s168 = smul.addr %s167, 2
      %s169 = smul.addr %s168, 8
      %s170 = scalar_lea.vmem %s3, %s169
      %v171 = vld [vmem:[%s165] sm:$0xff]
      %v172 = vlaneseq
      %v173 = vand.u32 %v172, 127
      %v174 = vadd.s32 %v173, 128
      %v175 = vshra.s32 %v173, 4
      %v176 = vshra.s32 %v174, 4
      %v177 = vand.u32 %v173, 15
      %v178 = vand.u32 %v174, 15
      %179 = vst [vmem:[#allocation2] sm:$0xff] 0.0
      %180 = vst [vmem:[#allocation2 + $0x8] sm:$0xff] 0.0
      %181 = vst [vmem:[#allocation2 + $0x10] sm:$0xff] 0.0
      %182 = vst [vmem:[#allocation2 + $0x18] sm:$0xff] 0.0
      %183 = vst [vmem:[#allocation2 + $0x20] sm:$0xff] 0.0
      %184 = vst [vmem:[#allocation2 + $0x28] sm:$0xff] 0.0
      %185 = vst [vmem:[#allocation2 + $0x30] sm:$0xff] 0.0
      %186 = vst [vmem:[#allocation2 + $0x38] sm:$0xff] 0.0
      %187 = vst [vmem:[#allocation2 + $0x40] sm:$0xff] 0.0
      %188 = vst [vmem:[#allocation2 + $0x48] sm:$0xff] 0.0
      %189 = vst [vmem:[#allocation2 + $0x50] sm:$0xff] 0.0
      %190 = vst [vmem:[#allocation2 + $0x58] sm:$0xff] 0.0
      %191 = vst [vmem:[#allocation2 + $0x60] sm:$0xff] 0.0
      %192 = vst [vmem:[#allocation2 + $0x68] sm:$0xff] 0.0
      %193 = vst [vmem:[#allocation2 + $0x70] sm:$0xff] 0.0
      %194 = vst [vmem:[#allocation2 + $0x78] sm:$0xff] 0.0
      %195 = vst [vmem:[#allocation2 + $0x80] sm:$0xff] 0.0
      %196 = vst [vmem:[#allocation2 + $0x88] sm:$0xff] 0.0
      %v198 = vcombine.high %v171, %v171
      %200 = vrot.lane.b32.xlu0 %v171, 17
      %v201 = vpop.permute.xlu0 %200
      %202 = vrot.lane.b32.xlu0 %v198, 17
      %v203 = vpop.permute.xlu0 %202
      %vm204 = vcmp.lt.s32.totalorder %v173, 17
      %v205 = vsel %vm204, %v201, %v203
      %v206 = vsel %vm204, %v203, %v201
      %v207 = vadd.s32 %v175, 4294967295
      %v208 = vadd.s32 %v176, 4294967295
      %vm209 = vcmp.ge.s32.totalorder %v207, 0
      %vm210 = vcmp.ge.s32.totalorder %v208, 0
      %vm211 = vcmp.lt.s32.totalorder %v207, 16
      %vm212 = vcmp.lt.s32.totalorder %v208, 16
      %vm213 = vmand %vm209, %vm211
      %vm214 = vmand %vm210, %vm212
      %v215 = vadd.s32 %v177, 4294967295
      %v216 = vadd.s32 %v178, 4294967295
      %vm217 = vcmp.ge.s32.totalorder %v215, 0
      %vm218 = vcmp.ge.s32.totalorder %v216, 0
      %vm219 = vmand %vm213, %vm217
      %vm220 = vmand %vm214, %vm218
      %vm221 = vcmp.lt.s32.totalorder %v215, 16
      %vm222 = vcmp.lt.s32.totalorder %v216, 16
      %vm223 = vmand %vm219, %vm221
      %vm224 = vmand %vm220, %vm222
      %v225 = vsel %vm223, 1, 0
      %v226 = vsel %vm224, 1, 0
      %vm227 = vcmp.eq.s32.totalorder %v225, 1
      %vm228 = vcmp.eq.s32.totalorder %v226, 1
      %v229 = vsel %vm227, %v206, 0.0
      %v230 = vsel %vm228, %v205, 0.0
      %231 = vst [vmem:[#allocation2] sm:$0xf] %v229
      %232 = vst [vmem:[#allocation2 + $0x8] sm:$0xf] %v230
      %233 = vrot.lane.b32.xlu0 %v171, 16
      %v234 = vpop.permute.xlu0 %233
      %235 = vrot.lane.b32.xlu0 %v198, 16
      %v236 = vpop.permute.xlu0 %235
      %vm237 = vcmp.lt.s32.totalorder %v173, 16
      %v238 = vsel %vm237, %v234, %v236
      %v239 = vsel %vm237, %v236, %v234
      %vm240 = vcmp.ge.s32.totalorder %v177, 0
      %vm241 = vcmp.ge.s32.totalorder %v178, 0
      %vm242 = vmand %vm213, %vm240
      %vm243 = vmand %vm214, %vm241
      %vm244 = vcmp.lt.s32.totalorder %v177, 16
      %vm245 = vcmp.lt.s32.totalorder %v178, 16
      %vm246 = vmand %vm242, %vm244
      %vm247 = vmand %vm243, %vm245
      %v248 = vsel %vm246, 1, 0
      %v249 = vsel %vm247, 1, 0
      %vm250 = vcmp.eq.s32.totalorder %v248, 1
      %vm251 = vcmp.eq.s32.totalorder %v249, 1
      %v252 = vsel %vm250, %v239, 0.0
      %v253 = vsel %vm251, %v238, 0.0
      %254 = vst [vmem:[#allocation2 + $0x10] sm:$0xf] %v252
      %255 = vst [vmem:[#allocation2 + $0x18] sm:$0xf] %v253
      %256 = vrot.lane.b32.xlu0 %v171, 15
      %v257 = vpop.permute.xlu0 %256
      %258 = vrot.lane.b32.xlu0 %v198, 15
      %v259 = vpop.permute.xlu0 %258
      %vm260 = vcmp.lt.s32.totalorder %v173, 15
      %v261 = vsel %vm260, %v257, %v259
      %v262 = vsel %vm260, %v259, %v257
      %v263 = vadd.s32 %v177, 1
      %v264 = vadd.s32 %v178, 1
      %vm265 = vcmp.ge.s32.totalorder %v263, 0
      %vm266 = vcmp.ge.s32.totalorder %v264, 0
      %vm267 = vmand %vm213, %vm265
      %vm268 = vmand %vm214, %vm266
      %vm269 = vcmp.lt.s32.totalorder %v263, 16
      %vm270 = vcmp.lt.s32.totalorder %v264, 16
      %vm271 = vmand %vm267, %vm269
      %vm272 = vmand %vm268, %vm270
      %v273 = vsel %vm271, 1, 0
      %v274 = vsel %vm272, 1, 0
      %vm275 = vcmp.eq.s32.totalorder %v273, 1
      %vm276 = vcmp.eq.s32.totalorder %v274, 1
      %v277 = vsel %vm275, %v262, 0.0
      %v278 = vsel %vm276, %v261, 0.0
      %279 = vst [vmem:[#allocation2 + $0x20] sm:$0xf] %v277
      %280 = vst [vmem:[#allocation2 + $0x28] sm:$0xf] %v278
      %281 = vrot.lane.b32.xlu0 %v171, 1
      %v282 = vpop.permute.xlu0 %281
      %283 = vrot.lane.b32.xlu0 %v198, 1
      %v284 = vpop.permute.xlu0 %283
      %vm285 = vcmp.lt.s32.totalorder %v173, 1
      %v286 = vsel %vm285, %v282, %v284
      %v287 = vsel %vm285, %v284, %v282
      %vm288 = vcmp.ge.s32.totalorder %v175, 0
      %vm289 = vcmp.ge.s32.totalorder %v176, 0
      %vm290 = vcmp.lt.s32.totalorder %v175, 16
      %vm291 = vcmp.lt.s32.totalorder %v176, 16
      %vm292 = vmand %vm288, %vm290
      %vm293 = vmand %vm289, %vm291
      %vm294 = vmand %vm292, %vm217
      %vm295 = vmand %vm293, %vm218
      %vm296 = vmand %vm294, %vm221
      %vm297 = vmand %vm295, %vm222
      %v298 = vsel %vm296, 1, 0
      %v299 = vsel %vm297, 1, 0
      %vm300 = vcmp.eq.s32.totalorder %v298, 1
      %vm301 = vcmp.eq.s32.totalorder %v299, 1
      %v302 = vsel %vm300, %v287, 0.0
      %v303 = vsel %vm301, %v286, 0.0
      %304 = vst [vmem:[#allocation2 + $0x30] sm:$0xf] %v302
      %305 = vst [vmem:[#allocation2 + $0x38] sm:$0xf] %v303
      %306 = vst [vmem:[#allocation2 + $0x40] sm:$0xf] %v171
      %307 = vst [vmem:[#allocation2 + $0x48] sm:$0xf] %v198
      %308 = vrot.lane.b32.xlu0 %v171, 127
      %v309 = vpop.permute.xlu0 %308
      %310 = vrot.lane.b32.xlu0 %v198, 127
      %v311 = vpop.permute.xlu0 %310
      %vm312 = vcmp.lt.s32.totalorder %v173, 127
      %v313 = vsel %vm312, %v309, %v311
      %v314 = vsel %vm312, %v311, %v309
      %vm315 = vmand %vm292, %vm265
      %vm316 = vmand %vm293, %vm266
      %vm317 = vmand %vm315, %vm269
      %vm318 = vmand %vm316, %vm270
      %v319 = vsel %vm317, 1, 0
      %v320 = vsel %vm318, 1, 0
      %vm321 = vcmp.eq.s32.totalorder %v319, 1
      %vm322 = vcmp.eq.s32.totalorder %v320, 1
      %v323 = vsel %vm321, %v313, 0.0
      %v324 = vsel %vm322, %v314, 0.0
      %325 = vst [vmem:[#allocation2 + $0x50] sm:$0xf] %v323
      %326 = vst [vmem:[#allocation2 + $0x58] sm:$0xf] %v324
      %327 = vrot.lane.b32.xlu0 %v171, 113
      %v328 = vpop.permute.xlu0 %327
      %329 = vrot.lane.b32.xlu0 %v198, 113
      %v330 = vpop.permute.xlu0 %329
      %vm331 = vcmp.lt.s32.totalorder %v173, 113
      %v332 = vsel %vm331, %v328, %v330
      %v333 = vsel %vm331, %v330, %v328
      %v334 = vadd.s32 %v175, 1
      %v335 = vadd.s32 %v176, 1
      %vm336 = vcmp.ge.s32.totalorder %v334, 0
      %vm337 = vcmp.ge.s32.totalorder %v335, 0
      %vm338 = vcmp.lt.s32.totalorder %v334, 16
      %vm339 = vcmp.lt.s32.totalorder %v335, 16
      %vm340 = vmand %vm336, %vm338
      %vm341 = vmand %vm337, %vm339
      %vm342 = vmand %vm340, %vm217
      %vm343 = vmand %vm341, %vm218
      %vm344 = vmand %vm342, %vm221
      %vm345 = vmand %vm343, %vm222
      %v346 = vsel %vm344, 1, 0
      %v347 = vsel %vm345, 1, 0
      %vm348 = vcmp.eq.s32.totalorder %v346, 1
      %vm349 = vcmp.eq.s32.totalorder %v347, 1
      %v350 = vsel %vm348, %v332, 0.0
      %v351 = vsel %vm349, %v333, 0.0
      %352 = vst [vmem:[#allocation2 + $0x60] sm:$0xf] %v350
      %353 = vst [vmem:[#allocation2 + $0x68] sm:$0xf] %v351
      %354 = vrot.lane.b32.xlu0 %v171, 112
      %v355 = vpop.permute.xlu0 %354
      %356 = vrot.lane.b32.xlu0 %v198, 112
      %v357 = vpop.permute.xlu0 %356
      %vm358 = vcmp.lt.s32.totalorder %v173, 112
      %v359 = vsel %vm358, %v355, %v357
      %v360 = vsel %vm358, %v357, %v355
      %vm361 = vmand %vm340, %vm240
      %vm362 = vmand %vm341, %vm241
      %vm363 = vmand %vm361, %vm244
      %vm364 = vmand %vm362, %vm245
      %v365 = vsel %vm363, 1, 0
      %v366 = vsel %vm364, 1, 0
      %vm367 = vcmp.eq.s32.totalorder %v365, 1
      %vm368 = vcmp.eq.s32.totalorder %v366, 1
      %v369 = vsel %vm367, %v359, 0.0
      %v370 = vsel %vm368, %v360, 0.0
      %371 = vst [vmem:[#allocation2 + $0x70] sm:$0xf] %v369
      %372 = vst [vmem:[#allocation2 + $0x78] sm:$0xf] %v370
      %373 = vrot.lane.b32.xlu0 %v171, 111
      %v374 = vpop.permute.xlu0 %373
      %375 = vrot.lane.b32.xlu0 %v198, 111
      %v376 = vpop.permute.xlu0 %375
      %vm377 = vcmp.lt.s32.totalorder %v173, 111
      %v378 = vsel %vm377, %v374, %v376
      %v379 = vsel %vm377, %v376, %v374
      %vm380 = vmand %vm340, %vm265
      %vm381 = vmand %vm341, %vm266
      %vm382 = vmand %vm380, %vm269
      %vm383 = vmand %vm381, %vm270
      %v384 = vsel %vm382, 1, 0
      %v385 = vsel %vm383, 1, 0
      %vm386 = vcmp.eq.s32.totalorder %v384, 1
      %vm387 = vcmp.eq.s32.totalorder %v385, 1
      %v388 = vsel %vm386, %v378, 0.0
      %v389 = vsel %vm387, %v379, 0.0
      %390 = vst [vmem:[#allocation2 + $0x80] sm:$0xf] %v388
      %391 = vst [vmem:[#allocation2 + $0x88] sm:$0xf] %v389
      %v392 = vld [vmem:[%s1] sm:$0xff]
      %v393 = vld [vmem:[#allocation2] sm:$0xff]
      %v394 = vld [vmem:[#allocation2 + $0x8] sm:$0xff]
      %v395 = vld [vmem:[#allocation2 + $0x10] sm:$0xff]
      %v396 = vld [vmem:[#allocation2 + $0x18] sm:$0xff]
      %v397 = vld [vmem:[#allocation2 + $0x20] sm:$0xff]
      %v398 = vld [vmem:[#allocation2 + $0x28] sm:$0xff]
      %v399 = vld [vmem:[#allocation2 + $0x30] sm:$0xff]
      %v400 = vld [vmem:[#allocation2 + $0x38] sm:$0xff]
      %v401 = vld [vmem:[#allocation2 + $0x40] sm:$0xff]
      %v402 = vld [vmem:[#allocation2 + $0x48] sm:$0xff]
      %v403 = vld [vmem:[#allocation2 + $0x50] sm:$0xff]
      %v404 = vld [vmem:[#allocation2 + $0x58] sm:$0xff]
      %v405 = vld [vmem:[#allocation2 + $0x60] sm:$0xff]
      %v406 = vld [vmem:[#allocation2 + $0x68] sm:$0xff]
      %v407 = vld [vmem:[#allocation2 + $0x70] sm:$0xff]
      %v408 = vld [vmem:[#allocation2 + $0x78] sm:$0xff]
      %v409 = vld [vmem:[#allocation2 + $0x80] sm:$0xff]
      %v410 = vld [vmem:[#allocation2 + $0x88] sm:$0xff]
      %v411 = vld [vmem:[%s2] sm:$0xff]
      %413 = vset.pattern.permute.xlu0 0
      %414 = vperm.xlu0 %413, %v411
      %v415 = vpop.permute.xlu0 %414
      %vm417 = vcmask 588800
      %v419 = vsel %vm417, %v392, 0
      %421 = vmatprep.subr.mxu0 0.0
      %422 = vmatpush1.msra.mxu0 0.0
      %423 = vmatprep.subr.mxu0 0.0
      %424 = vmatpush1.msra.mxu0 0.0
      %425 = vmatprep.subr.mxu0 0.0
      %426 = vmatpush1.msra.mxu0 0.0
      %427 = vmatprep.subr.mxu0 0.0
      %428 = vmatpush1.msra.mxu0 0.0
      %429 = vmatprep.subr.mxu0 0.0
      %430 = vmatpush1.msra.mxu0 0.0
      %431 = vmatprep.subr.mxu0 0.0
      %432 = vmatpush1.msra.mxu0 0.0
      %433 = vmatprep.subr.mxu0 0.0
      %434 = vmatpush1.msra.mxu0 0.0
      %435 = vmatprep.subr.mxu0 %v410
      %436 = vmatpush1.msra.mxu0 %v409
      %437 = vmatprep.subr.mxu0 %v408
      %438 = vmatpush1.msra.mxu0 %v407
      %439 = vmatprep.subr.mxu0 %v406
      %440 = vmatpush1.msra.mxu0 %v405
      %441 = vmatprep.subr.mxu0 %v404
      %442 = vmatpush1.msra.mxu0 %v403
      %443 = vmatprep.subr.mxu0 %v402
      %444 = vmatpush1.msra.mxu0 %v401
      %445 = vmatprep.subr.mxu0 %v400
      %446 = vmatpush1.msra.mxu0 %v399
      %447 = vmatprep.subr.mxu0 %v398
      %448 = vmatpush1.msra.mxu0 %v397
      %449 = vmatprep.subr.mxu0 %v396
      %450 = vmatpush1.msra.mxu0 %v395
      %451 = vmatprep.subr.mxu0 %v394
      %452 = vmatpush1.msra.mxu0 %v393
      %453 = vmatprep.subr.mxu0 0.0
      %454 = vmatpush2.msra.mxu0 0.0
      %455 = vmatprep.subr.mxu0 0.0
      %456 = vmatpush2.msra.mxu0 0.0
      %457 = vmatprep.subr.mxu0 0.0
      %458 = vmatpush2.msra.mxu0 0.0
      %459 = vmatprep.subr.mxu0 0.0
      %460 = vmatpush2.msra.mxu0 0.0
      %461 = vmatprep.subr.mxu0 0.0
      %462 = vmatpush2.msra.mxu0 0.0
      %463 = vmatprep.subr.mxu0 0.0
      %464 = vmatpush2.msra.mxu0 0.0
      %465 = vmatprep.subr.mxu0 0.0
      %466 = vmatpush2.msra.mxu0 0.0
      %467 = vmatprep.subr.mxu0 0.0
      %468 = vmatpush2.msra.mxu0 0.0
      %469 = vmatprep.subr.mxu0 0.0
      %470 = vmatpush2.msra.mxu0 0.0
      %471 = vmatprep.subr.mxu0 0.0
      %472 = vmatpush2.msra.mxu0 0.0
      %473 = vmatprep.subr.mxu0 0.0
      %474 = vmatpush2.msra.mxu0 0.0
      %475 = vmatprep.subr.mxu0 0.0
      %476 = vmatpush2.msra.mxu0 0.0
      %477 = vmatprep.subr.mxu0 0.0
      %478 = vmatpush2.msra.mxu0 0.0
      %479 = vmatprep.subr.mxu0 0.0
      %480 = vmatpush2.msra.mxu0 0.0
      %481 = vmatprep.subr.mxu0 0.0
      %482 = vmatpush2.msra.mxu0 0.0
      %483 = vmatprep.subr.mxu0 0.0
      %484 = vmatpush2.msra.mxu0 0.0
      %485 = vmatprep.mubr.f32.mxu0 0.0
      %486 = vmatmul.mubr.f32.gmra.mxu0 %v419
      %v487 = vpop.f32.mrf.mxu0
      %v488 = vadd.f32 %v415, %v487
      %v489 = vpop.f32.mrf.mxu0
      %v490 = vadd.f32 %v415, %v489
      %491 = vdwg.mxu0
      %vm492 = vcmp.gt.f32.partialorder %v488, 0.0
      %vm493 = vcmp.gt.f32.partialorder %v490, 0.0
      %v494 = vmul.f32 %v488, 0.2
      %v495 = vmul.f32 %v490, 0.2
      %v496 = vsel %vm492, %v488, %v494
      %v497 = vsel %vm493, %v490, %v495
      %498 = vst [vmem:[%s170] sm:$0xff] %v496
      %499 = vst [vmem:[%s170 + $0x8] sm:$0xff] %v497
      %p500 = scmp.lt.s32.totalorder %s14, 1
      %s501 = scalar_select %p500, %s14, 1
      %s502 = smul.addr %s501, 2
      %s503 = smul.addr %s502, 8
      %s504 = scalar_lea.vmem %s3, %s503
      // Predicated region
      $region33: #{conv_block_forward.1} parent=31 // pred_check
        %p505 = pneg %p100
      $region34: #{conv_block_forward.1} parent=31 // pred_check_branch
        %507 = sbr.rel (%p505) target = $region36
      $region35: #{conv_block_forward.1} parent=31 // pred_region
        _
      $region36: #{conv_block_forward.1} parent=31 // pred_fallthru
        _
    $region32: #{conv_block_forward.1} parent=5 // pred_fallthru
      _
    %p508 = scmp.le.s32.totalorder 2, %s9
    // Predicated region
    $region37: #{conv_block_forward.1} parent=5 // pred_check
      %p509 = pneg %p508
    $region38: #{conv_block_forward.1} parent=5 // pred_check_branch
      %511 = sbr.rel (%p509) target = $region40
    $region39: #{conv_block_forward.1} parent=5 // pred_region
      %s512 = ssub.s32 %s9, 2
      // Predicated region
      $region41: #{conv_block_forward.1} parent=39 // pred_check
        %p513 = pneg %p106
      $region42: #{conv_block_forward.1} parent=39 // pred_check_branch
        %515 = sbr.rel (%p513) target = $region44
      $region43: #{conv_block_forward.1} parent=39 // pred_region
        %p516 = scmp.lt.s32.totalorder %s15, 1
        %s517 = scalar_select %p516, %s15, 1
        %s518 = smul.addr %s517, 2
        %s519 = smul.addr %s518, 8
        %s520 = scalar_lea.vmem %s3, %s519
      $region44: #{conv_block_forward.1} parent=39 // pred_fallthru
        _
    $region40: #{conv_block_forward.1} parent=5 // pred_fallthru
      _
  $region6: #{conv_block_forward.1} parent=0 // loop_footer
    %s13 = sadd.s32 1, %s9
  $region7: #{conv_block_forward.1} parent=0 // loop_footer_branch
    %8 = sbr.rel target = $region3
  $region8: #{conv_block_forward.1} parent=0 // loop_exit
    _

</llo_original>
